<compile_context>
chip_gen: v6e
topology: v6e:2x2x1
jax: 0.10.0
libtpu: 0.0.40
codegen_flags: <defaults>
</compile_context>

<pallas_src>
import jax
import jax.numpy as jnp
from jax.experimental import pallas as pl
from jax.experimental.pallas import tpu as pltpu


def _pick_query_tile(hw: int) -> int:
    for tq in (512, 256, 128):
        if hw % tq == 0:
            return tq
    return hw


def pam_module(x, params, *, tq=None):
    """x: (B, C, H, W) f32. params: wq/wk (C//8,C), wv (C,C), bq/bk (C//8,), bv (C,), gamma (1,)."""
    B, C, H, W = x.shape
    HW = H * W
    C8 = params["wq"].shape[0]
    assert C8 == C // 8 and params["wv"].shape == (C, C)
    assert C % 8 == 0, "channel count must be sublane-aligned"
    assert HW % 128 == 0, "flattened spatial dim must be lane-aligned"

    f32, bf16 = jnp.float32, jnp.bfloat16
    C8P = ((C8 + 7) // 8) * 8                      # pad q/k sections to 8-row tiles
    TQ = tq if tq is not None else _pick_query_tile(HW)
    assert HW % TQ == 0 and TQ % 128 == 0
    nq = HW // TQ

    # ---- wrapper-side parameter packing (traced once) ------------------------
    def pad_rows(w):
        return jnp.zeros((C8P, C), w.dtype).at[: w.shape[0]].set(w)

    wq_p = pad_rows(params["wq"]).astype(bf16)                          # (C8P, C)
    bq_p = jnp.zeros((C8P, 1), f32).at[:C8, 0].set(params["bq"])        # (C8P, 1)
    wkv = jnp.concatenate([pad_rows(params["wk"]), params["wv"]], 0).astype(bf16)
    bkv = jnp.concatenate(
        [jnp.zeros((C8P,), f32).at[:C8].set(params["bk"]), params["bv"]], 0
    ).reshape(C8P + C, 1)                                               # (C8P+C, 1)

    x_flat = x.reshape(B, C, HW)                   # lane-dense last dim

    # ---- kernel ---------------------------------------------------------------
    def kernel(x_ref, wq_ref, bq_ref, wkv_ref, bkv_ref, gamma_ref, out_ref):
        col0 = pl.multiple_of(pl.program_id(1) * TQ, TQ)

        x_full = x_ref[...]                        # (C, HW) f32 (per-batch resident block)
        x_bf = x_full.astype(bf16)
        x_tile = x_ref[:, pl.ds(col0, TQ)]         # (C, TQ) f32, residual + query input

        # Fused key/value 1x1 convs over all keys: one stacked bf16 MXU matmul.
        kv = jnp.dot(wkv_ref[...], x_bf, preferred_element_type=f32) + bkv_ref[...]
        k = kv[:C8P, :].astype(bf16)               # (C8P, HW); padded rows exactly 0
        v = kv[C8P:, :].astype(bf16)               # (C,  HW)

        # Query conv only for this query tile.
        q = (jnp.dot(wq_ref[...], x_tile.astype(bf16),
                     preferred_element_type=f32) + bq_ref[...]).astype(bf16)  # (C8P, TQ)

        # energy_T[j, i] = sum_c k[c, j] * q[c, i]  (tiny k transpose only).
        energy_t = jax.lax.dot_general(
            k, q, (((0,), (0,)), ((), ())), preferred_element_type=f32)       # (HW, TQ)

        # Softmax over keys = axis 0 (sublane axis); keep probabilities unnormalized.
        m = jnp.max(energy_t, axis=0, keepdims=True)      # (1, TQ)
        e = jnp.exp(energy_t - m)                          # f32
        s = jnp.sum(e, axis=0, keepdims=True)              # (1, TQ)
        p = e.astype(bf16)

        # out[c, i] = sum_j v[c, j] * p[j, i]  -- natural (M,K)x(K,N) MXU matmul.
        out = jnp.dot(v, p, preferred_element_type=f32)    # (C, TQ)

        # Fold softmax denominator and gamma into one (1, TQ) scale; residual add.
        scale = gamma_ref[0] * pl.reciprocal(s, approx=False)
        out_ref[...] = (out * scale + x_tile).astype(out_ref.dtype)

    # VMEM budget: attention temporaries + conv outputs + double-buffered I/O blocks.
    est = (HW * TQ * 10                       # energy_t f32 + e f32 + p bf16
           + (C8P + C) * HW * 6 + C8P * TQ * 6
           + 4 * C * HW * 4 + 4 * C * TQ * 4)
    vmem_limit = int(min(max(2 * est, 32 * 1024 * 1024), 48 * 1024 * 1024))

    out_flat = pl.pallas_call(
        kernel,
        out_shape=jax.ShapeDtypeStruct((B, C, HW), f32),
        grid=(B, nq),
        in_specs=[
            pl.BlockSpec((None, C, HW), lambda b, i: (b, 0, 0)),   # x (resident per batch)
            pl.BlockSpec((C8P, C), lambda b, i: (0, 0)),           # wq (bf16, row-padded)
            pl.BlockSpec((C8P, 1), lambda b, i: (0, 0)),           # bq
            pl.BlockSpec((C8P + C, C), lambda b, i: (0, 0)),       # [wk_pad; wv] (bf16)
            pl.BlockSpec((C8P + C, 1), lambda b, i: (0, 0)),       # [bk_pad; bv]
            pl.BlockSpec(memory_space=pltpu.MemorySpace.SMEM),     # gamma scalar
        ],
        out_specs=pl.BlockSpec((None, C, TQ), lambda b, i: (b, 0, i)),
        compiler_params=pltpu.CompilerParams(
            dimension_semantics=("parallel", "parallel"),
            vmem_limit_bytes=vmem_limit),
    )(x_flat, wq_p, bq_p, wkv, bkv, params["gamma"])

    return out_flat.reshape(B, C, H, W)


def pam_ref(x, params):
    """Plain-JAX (full f32, HIGHEST precision) reference for correctness checking."""
    B, C, H, W = x.shape
    HW = H * W
    hp = jax.lax.Precision.HIGHEST
    xf = x.reshape(B, C, HW)
    q = jnp.einsum("oc,bci->boi", params["wq"], xf, precision=hp) \
        + params["bq"][None, :, None]
    k = jnp.einsum("oc,bci->boi", params["wk"], xf, precision=hp) \
        + params["bk"][None, :, None]
    v = jnp.einsum("oc,bci->boi", params["wv"], xf, precision=hp) \
        + params["bv"][None, :, None]
    energy = jnp.einsum("bci,bcj->bij", q, k, precision=hp)
    attn = jax.nn.softmax(energy, axis=-1)
    out = jnp.einsum("bcj,bij->bci", v, attn, precision=hp)
    out = params["gamma"][0] * out + xf
    return out.reshape(B, C, H, W)


if __name__ == "__main__":
    key = jax.random.PRNGKey(0)
    B, C, H, W = 2, 32, 16, 16
    C8 = C // 8

    ks = jax.random.split(key, 7)
    params = {
        "wq": 0.1 * jax.random.normal(ks[0], (C8, C), jnp.float32),
        "wk": 0.1 * jax.random.normal(ks[1], (C8, C), jnp.float32),
        "wv": 0.1 * jax.random.normal(ks[2], (C, C), jnp.float32),
        "bq": 0.1 * jax.random.normal(ks[3], (C8,), jnp.float32),
        "bk": 0.1 * jax.random.normal(ks[4], (C8,), jnp.float32),
        "bv": 0.1 * jax.random.normal(ks[5], (C,), jnp.float32),
        # PyTorch initializes gamma to 0 (identity output); use a nonzero value
        # here so the attention path is actually exercised by the check.
        "gamma": jnp.array([0.5], jnp.float32),
    }
    x = jax.random.normal(ks[6], (B, C, H, W), jnp.float32)

    # tq=128 forces the multi-query-tile path (HW=256 -> 2 query tiles per batch).
    out = jax.block_until_ready(pam_module(x, params, tq=128))
    ref = pam_ref(x, params)

    assert out.shape == (B, C, H, W)
    assert bool(jnp.all(jnp.isfinite(out)))
    max_err = float(jnp.max(jnp.abs(out - ref)))
    # bf16 MXU operands vs. f32 HIGHEST-precision reference -> loosened tolerance.
    assert bool(jnp.allclose(out, ref, atol=3e-2, rtol=3e-2)), max_err
    print("KERNEL_OK")
</pallas_src>

<mosaic_0001>
module attributes {stable_mosaic.version = 11 : i64} {
  func.func @kernel(%arg0: i32, %arg1: i32, %arg2: memref<1x32x256xf32, #tpu.memory_space<vmem>>, %arg3: memref<8x32xbf16, #tpu.memory_space<vmem>>, %arg4: memref<8x1xf32, #tpu.memory_space<vmem>>, %arg5: memref<40x32xbf16, #tpu.memory_space<vmem>>, %arg6: memref<40x1xf32, #tpu.memory_space<vmem>>, %arg7: memref<1xf32, #tpu.memory_space<smem>>, %arg8: memref<1x32x128xf32, #tpu.memory_space<vmem>>) attributes {dimension_semantics = [#tpu.dimension_semantics<parallel>, #tpu.dimension_semantics<parallel>], iteration_bounds = array<i64: 2, 2>, scalar_prefetch = 0 : i64, scratch_operands = 0 : i64, tpu.core_type = #tpu.core_type<tc>, window_params = [{transform_indices = @transform_0, window_bounds = array<i64: 1, 32, 256>}, {pipeline_mode = #tpu.pipeline_mode<synchronous>, transform_indices = @transform_1, window_bounds = array<i64: 8, 32>}, {pipeline_mode = #tpu.pipeline_mode<synchronous>, transform_indices = @transform_2, window_bounds = array<i64: 8, 1>}, {pipeline_mode = #tpu.pipeline_mode<synchronous>, transform_indices = @transform_3, window_bounds = array<i64: 40, 32>}, {pipeline_mode = #tpu.pipeline_mode<synchronous>, transform_indices = @transform_4, window_bounds = array<i64: 40, 1>}, {transform_indices = @transform_5, window_bounds = array<i64: 1>}, {transform_indices = @transform_6, window_bounds = array<i64: 1, 32, 128>}]} {
    %c128_i32 = arith.constant 128 : i32
    %0 = arith.muli %arg1, %c128_i32 : i32
    %1 = tpu.assume_multiple %0, 128 : i32
    %c0 = arith.constant 0 : index
    %c0_0 = arith.constant 0 : index
    %c0_1 = arith.constant 0 : index
    %2 = vector.load %arg2[%c0, %c0_0, %c0_1] : memref<1x32x256xf32, #tpu.memory_space<vmem>>, vector<1x32x256xf32>
    %3 = vector.shape_cast %2 : vector<1x32x256xf32> to vector<32x256xf32>
    %4 = arith.truncf %3 : vector<32x256xf32> to vector<32x256xbf16>
    %c0_2 = arith.constant 0 : index
    %c0_3 = arith.constant 0 : index
    %5 = arith.index_cast %1 : i32 to index
    %6 = vector.load %arg2[%c0_2, %c0_3, %5] : memref<1x32x256xf32, #tpu.memory_space<vmem>>, vector<1x32x128xf32>
    %7 = vector.shape_cast %6 : vector<1x32x128xf32> to vector<32x128xf32>
    %c0_4 = arith.constant 0 : index
    %c0_5 = arith.constant 0 : index
    %8 = vector.load %arg5[%c0_4, %c0_5] : memref<40x32xbf16, #tpu.memory_space<vmem>>, vector<40x32xbf16>
    %cst = arith.constant dense<0.000000e+00> : vector<40x256xf32>
    %9 = tpu.matmul %8, %4, %cst {dimension_numbers = #tpu.dot_dimension_numbers<[1], [0], [0], [1], [0, 0, 1, 1], [], []>} : vector<40x32xbf16>, vector<32x256xbf16>, vector<40x256xf32> -> vector<40x256xf32>
    %c0_6 = arith.constant 0 : index
    %c0_7 = arith.constant 0 : index
    %10 = vector.load %arg6[%c0_6, %c0_7] : memref<40x1xf32, #tpu.memory_space<vmem>>, vector<40x1xf32>
    %11 = vector.broadcast %10 : vector<40x1xf32> to vector<40x256xf32>
    %12 = arith.addf %9, %11 : vector<40x256xf32>
    %13 = vector.extract_strided_slice %12 {offsets = [0, 0], sizes = [8, 256], strides = [1, 1]} : vector<40x256xf32> to vector<8x256xf32>
    %14 = arith.truncf %13 : vector<8x256xf32> to vector<8x256xbf16>
    %15 = vector.extract_strided_slice %12 {offsets = [8, 0], sizes = [32, 256], strides = [1, 1]} : vector<40x256xf32> to vector<32x256xf32>
    %16 = arith.truncf %15 : vector<32x256xf32> to vector<32x256xbf16>
    %c0_8 = arith.constant 0 : index
    %c0_9 = arith.constant 0 : index
    %17 = vector.load %arg3[%c0_8, %c0_9] : memref<8x32xbf16, #tpu.memory_space<vmem>>, vector<8x32xbf16>
    %18 = arith.truncf %7 : vector<32x128xf32> to vector<32x128xbf16>
    %cst_10 = arith.constant dense<0.000000e+00> : vector<8x128xf32>
    %19 = tpu.matmul %17, %18, %cst_10 {dimension_numbers = #tpu.dot_dimension_numbers<[1], [0], [0], [1], [0, 0, 1, 1], [], []>} : vector<8x32xbf16>, vector<32x128xbf16>, vector<8x128xf32> -> vector<8x128xf32>
    %c0_11 = arith.constant 0 : index
    %c0_12 = arith.constant 0 : index
    %20 = vector.load %arg4[%c0_11, %c0_12] : memref<8x1xf32, #tpu.memory_space<vmem>>, vector<8x1xf32>
    %21 = vector.broadcast %20 : vector<8x1xf32> to vector<8x128xf32>
    %22 = arith.addf %19, %21 : vector<8x128xf32>
    %23 = arith.truncf %22 : vector<8x128xf32> to vector<8x128xbf16>
    %cst_13 = arith.constant dense<0.000000e+00> : vector<256x128xf32>
    %24 = tpu.matmul %14, %23, %cst_13 {dimension_numbers = #tpu.dot_dimension_numbers<[0], [0], [1], [1], [0, 1, 1, 1], [], []>} : vector<8x256xbf16>, vector<8x128xbf16>, vector<256x128xf32> -> vector<256x128xf32>
    %cst_14 = arith.constant dense<0xFF800000> : vector<128xf32>
    %25 = vector.multi_reduction <maximumf>, %24, %cst_14 [0] : vector<256x128xf32> to vector<128xf32>
    %26 = vector.shape_cast %25 : vector<128xf32> to vector<1x128xf32>
    %27 = vector.broadcast %26 : vector<1x128xf32> to vector<256x128xf32>
    %28 = arith.subf %24, %27 : vector<256x128xf32>
    %29 = math.exp %28 : vector<256x128xf32>
    %cst_15 = arith.constant dense<0.000000e+00> : vector<128xf32>
    %30 = vector.multi_reduction <add>, %29, %cst_15 [0] : vector<256x128xf32> to vector<128xf32>
    %31 = vector.shape_cast %30 : vector<128xf32> to vector<1x128xf32>
    %32 = arith.truncf %29 : vector<256x128xf32> to vector<256x128xbf16>
    %cst_16 = arith.constant dense<0.000000e+00> : vector<32x128xf32>
    %33 = tpu.matmul %16, %32, %cst_16 {dimension_numbers = #tpu.dot_dimension_numbers<[1], [0], [0], [1], [0, 0, 1, 1], [], []>} : vector<32x256xbf16>, vector<256x128xbf16>, vector<32x128xf32> -> vector<32x128xf32>
    %c0_17 = arith.constant 0 : index
    %34 = memref.load %arg7[%c0_17] : memref<1xf32, #tpu.memory_space<smem>>
    %35 = tpu.reciprocal %31 : vector<1x128xf32> -> vector<1x128xf32>
    %36 = vector.broadcast %34 : f32 to vector<1x128xf32>
    %37 = arith.mulf %36, %35 : vector<1x128xf32>
    %38 = vector.broadcast %37 : vector<1x128xf32> to vector<32x128xf32>
    %39 = arith.mulf %33, %38 : vector<32x128xf32>
    %40 = arith.addf %39, %7 : vector<32x128xf32>
    %c0_18 = arith.constant 0 : index
    %c0_19 = arith.constant 0 : index
    %c0_20 = arith.constant 0 : index
    %41 = vector.load %arg8[%c0_18, %c0_19, %c0_20] : memref<1x32x128xf32, #tpu.memory_space<vmem>>, vector<1x32x128xf32>
    %42 = vector.shape_cast %41 : vector<1x32x128xf32> to vector<32x128xf32>
    %43 = vector.shape_cast %40 : vector<32x128xf32> to vector<1x32x128xf32>
    tpu.vector_store %arg8[%c0_18, %c0_19, %c0_20], %43 {strides = array<i32>} : memref<1x32x128xf32, #tpu.memory_space<vmem>>, vector<1x32x128xf32>,
    return
  }
  func.func @transform_0(%arg0: i32, %arg1: i32) -> (i32, i32, i32) {
    %c0_i32 = arith.constant 0 : i32
    %c0_i32_0 = arith.constant 0 : i32
    %c0_i32_1 = arith.constant 0 : i32
    return %arg0, %c0_i32, %c0_i32_0 : i32, i32, i32
  }
  func.func @transform_1(%arg0: i32, %arg1: i32) -> (i32, i32) {
    %c0_i32 = arith.constant 0 : i32
    %c0_i32_0 = arith.constant 0 : i32
    %c0_i32_1 = arith.constant 0 : i32
    return %c0_i32, %c0_i32_0 : i32, i32
  }
  func.func @transform_2(%arg0: i32, %arg1: i32) -> (i32, i32) {
    %c0_i32 = arith.constant 0 : i32
    %c0_i32_0 = arith.constant 0 : i32
    %c0_i32_1 = arith.constant 0 : i32
    return %c0_i32, %c0_i32_0 : i32, i32
  }
  func.func @transform_3(%arg0: i32, %arg1: i32) -> (i32, i32) {
    %c0_i32 = arith.constant 0 : i32
    %c0_i32_0 = arith.constant 0 : i32
    %c0_i32_1 = arith.constant 0 : i32
    return %c0_i32, %c0_i32_0 : i32, i32
  }
  func.func @transform_4(%arg0: i32, %arg1: i32) -> (i32, i32) {
    %c0_i32 = arith.constant 0 : i32
    %c0_i32_0 = arith.constant 0 : i32
    %c0_i32_1 = arith.constant 0 : i32
    return %c0_i32, %c0_i32_0 : i32, i32
  }
  func.func @transform_5(%arg0: i32, %arg1: i32) -> i32 {
    %c0_i32 = arith.constant 0 : i32
    %c0_i32_0 = arith.constant 0 : i32
    return %c0_i32 : i32
  }
  func.func @transform_6(%arg0: i32, %arg1: i32) -> (i32, i32, i32) {
    %c0_i32 = arith.constant 0 : i32
    %c0_i32_0 = arith.constant 0 : i32
    return %arg0, %c0_i32, %arg1 : i32, i32, i32
  }
}

</mosaic_0001>

<llo_original>
// kernel: tpu_custom_call.1
$region0: #{tpu_custom_call.1}
  #allocation0 [shape = 'u32[]', space=smem, size = 0x4, offset = 0x4, fixed_abs, tag = 'smem constant byte address 0x4 - core index']
  #allocation1 [shape = 'u32[144,128]{1,0:T(1,128)}', space=vmem, size = 0x12000, scoped, tag = 'internal scratch']
  #allocation2 [shape = 'f32[1]{0:T(128)S(6)}', space=smem, size = 0x200, scoped, tag = 'scoped memory for tpu_custom_call.1']
  %s0 = inlined_call_operand.hbm [shape: f32[2,32,256], index: 0, kind: input, shape index: {}]
  %s1 = inlined_call_operand.vmem [shape: bf16[8,32], index: 1, kind: input, shape index: {}]
  %s2 = inlined_call_operand.vmem [shape: f32[8,1], index: 2, kind: input, shape index: {}]
  %s3 = inlined_call_operand.vmem [shape: bf16[40,32], index: 3, kind: input, shape index: {}]
  %s4 = inlined_call_operand.vmem [shape: f32[40,1], index: 4, kind: input, shape index: {}]
  %s5 = inlined_call_operand.<no memory space> [shape: f32[1], index: 5, kind: input, shape index: {}]
  %s6 = inlined_call_operand.hbm [shape: f32[2,32,256], index: 6, kind: output, shape index: {}]
  %s7 = sld [smem:[#allocation0]]
  $region61: #{tpu_custom_call.1} parent=0
    _
  %s9 = ssub.s32 1, %s7
  %s10 = scalar_select 0, %s9, %s7
  %11 = sst [smem:[#allocation2]] %s5
  $region1: #{tpu_custom_call.1} parent=0
    #allocation3 [shape = 'u8[65536]{0}', space=vmem, size = 0x10000, scoped, tag = 'input window, operand 0']
    #allocation4 [shape = 's32[2]{0}', space=sflag, size = 0x8, scoped, tag = 'scoped memory for tpu_custom_call.1']
    #allocation5 [shape = 's32[2]{0}', space=sflag, size = 0x8, scoped, tag = 'scoped memory for tpu_custom_call.1']
    #allocation6 [shape = 'u8[32768]{0}', space=vmem, size = 0x8000, scoped, tag = 'output window, operand 0']
    %12 = vsyncpa [#allocation4], 0
    %s13 = scalar_lea.sflag [#allocation4], 1
    %14 = vsyncpa %s13, 0
    %15 = vsyncpa [#allocation5], 0
    %s16 = scalar_lea.sflag [#allocation5], 1
    %17 = vsyncpa %s16, 0
    loop: start=0, step=1, limit=6
    $region2: #{tpu_custom_call.1} parent=1 // loop_pre_header
      _
    $region3: #{tpu_custom_call.1} parent=1 // loop_header
      %s19 = sphi 0, %s23
      %p20 = scmp.ge.s32.totalorder %s19, 6
      %s26 = sphi 0, %s38
      %s27 = sphi 0, %s34
      %s28 = sphi 0, %s26
      %s29 = sphi 0, %s27
      %s30 = sphi 0, %s28
      %s31 = sphi 0, %s29
      %s41 = sphi 0, %s43
      %s44 = sphi 0, %s41
      %s45 = sphi 0, %s44
      %s61 = sphi 0, %s45
      %s65 = sphi 0, %s65
      %s67 = sphi 0, %s65
      %s68 = sphi 0, %s67
      %s82 = sphi 0, %s68
      %s86 = sphi 0, %s86
      %s88 = sphi 0, %s86
      %s89 = sphi 0, %s88
      %s103 = sphi 0, %s89
      %s107 = sphi 0, %s107
      %s109 = sphi 0, %s107
      %s110 = sphi 0, %s109
      %s124 = sphi 0, %s110
      %s128 = sphi 0, %s128
      %s130 = sphi 0, %s128
      %s131 = sphi 0, %s130
      %s145 = sphi 0, %s131
      %s149 = sphi 0, %s149
      %s151 = sphi 0, %s149
      %s152 = sphi 0, %s151
      %s166 = sphi 0, %s152
      %s174 = sphi 0, %s176
      %s177 = sphi 0, %s174
      %s178 = sphi 0, %s177
      %s194 = sphi 0, %s178
    $region4: #{tpu_custom_call.1} parent=1 // loop_header_branch
      %22 = sbr.rel (%p20) target = $region8
    $region5: #{tpu_custom_call.1} parent=1 // loop_body
      %s24 = ssub.s32 %s19, 1
      %s25 = ssub.s32 %s19, 2
      %s32 = sadd.s32 1, %s27
      %p33 = scmp.ge.s32.totalorder %s32, 2
      %s34 = scalar_select %p33, 0, %s32
      %s35 = sadd.s32 1, %s26
      %s36 = scalar_select %p33, %s35, %s26
      %p37 = scmp.ge.s32.totalorder %s36, 2
      %s38 = scalar_select %p37, 0, %s36
      %s39 = ssub.s32 %s26, %s38
      %p40 = scmp.eq.s32.totalorder %s39, 0
      %s42 = sadd.s32 %s41, 1
      %s43 = scalar_select %p40, %s41, %s42
      %p46 = pneg %p40
      %p47 = scmp.eq.s32.totalorder %s19, 3
      %p48 = por %p46, %p47
      %p49 = scmp.ne.s32.totalorder %s41, %s44
      %p50 = scmp.eq.s32.totalorder %s19, 0
      %p51 = por %p49, %p50
      %p52 = scmp.ne.s32.totalorder %s41, %s44
      %p53 = scmp.eq.s32.totalorder %s24, 3
      %p54 = por %p52, %p53
      %p55 = scmp.ne.s32.totalorder %s44, %s45
      %p56 = scmp.eq.s32.totalorder %s24, 0
      %p57 = por %p55, %p56
      %p58 = scmp.ne.s32.totalorder %s44, %s45
      %p59 = scmp.eq.s32.totalorder %s25, 3
      %p60 = por %p58, %p59
      %p62 = scmp.ne.s32.totalorder %s45, %s61
      %p63 = scmp.eq.s32.totalorder %s25, 0
      %p64 = por %p62, %p63
      %s66 = sadd.s32 %s65, 1
      %p69 = scmp.eq.s32.totalorder %s19, 3
      %p70 = scmp.ne.s32.totalorder %s65, %s67
      %p71 = scmp.eq.s32.totalorder %s19, 0
      %p72 = por %p70, %p71
      %p73 = scmp.ne.s32.totalorder %s65, %s67
      %p74 = scmp.eq.s32.totalorder %s24, 3
      %p75 = por %p73, %p74
      %p76 = scmp.ne.s32.totalorder %s67, %s68
      %p77 = scmp.eq.s32.totalorder %s24, 0
      %p78 = por %p76, %p77
      %p79 = scmp.ne.s32.totalorder %s67, %s68
      %p80 = scmp.eq.s32.totalorder %s25, 3
      %p81 = por %p79, %p80
      %p83 = scmp.ne.s32.totalorder %s68, %s82
      %p84 = scmp.eq.s32.totalorder %s25, 0
      %p85 = por %p83, %p84
      %s87 = sadd.s32 %s86, 1
      %p90 = scmp.eq.s32.totalorder %s19, 3
      %p91 = scmp.ne.s32.totalorder %s86, %s88
      %p92 = scmp.eq.s32.totalorder %s19, 0
      %p93 = por %p91, %p92
      %p94 = scmp.ne.s32.totalorder %s86, %s88
      %p95 = scmp.eq.s32.totalorder %s24, 3
      %p96 = por %p94, %p95
      %p97 = scmp.ne.s32.totalorder %s88, %s89
      %p98 = scmp.eq.s32.totalorder %s24, 0
      %p99 = por %p97, %p98
      %p100 = scmp.ne.s32.totalorder %s88, %s89
      %p101 = scmp.eq.s32.totalorder %s25, 3
      %p102 = por %p100, %p101
      %p104 = scmp.ne.s32.totalorder %s89, %s103
      %p105 = scmp.eq.s32.totalorder %s25, 0
      %p106 = por %p104, %p105
      %s108 = sadd.s32 %s107, 1
      %p111 = scmp.eq.s32.totalorder %s19, 3
      %p112 = scmp.ne.s32.totalorder %s107, %s109
      %p113 = scmp.eq.s32.totalorder %s19, 0
      %p114 = por %p112, %p113
      %p115 = scmp.ne.s32.totalorder %s107, %s109
      %p116 = scmp.eq.s32.totalorder %s24, 3
      %p117 = por %p115, %p116
      %p118 = scmp.ne.s32.totalorder %s109, %s110
      %p119 = scmp.eq.s32.totalorder %s24, 0
      %p120 = por %p118, %p119
      %p121 = scmp.ne.s32.totalorder %s109, %s110
      %p122 = scmp.eq.s32.totalorder %s25, 3
      %p123 = por %p121, %p122
      %p125 = scmp.ne.s32.totalorder %s110, %s124
      %p126 = scmp.eq.s32.totalorder %s25, 0
      %p127 = por %p125, %p126
      %s129 = sadd.s32 %s128, 1
      %p132 = scmp.eq.s32.totalorder %s19, 3
      %p133 = scmp.ne.s32.totalorder %s128, %s130
      %p134 = scmp.eq.s32.totalorder %s19, 0
      %p135 = por %p133, %p134
      %p136 = scmp.ne.s32.totalorder %s128, %s130
      %p137 = scmp.eq.s32.totalorder %s24, 3
      %p138 = por %p136, %p137
      %p139 = scmp.ne.s32.totalorder %s130, %s131
      %p140 = scmp.eq.s32.totalorder %s24, 0
      %p141 = por %p139, %p140
      %p142 = scmp.ne.s32.totalorder %s130, %s131
      %p143 = scmp.eq.s32.totalorder %s25, 3
      %p144 = por %p142, %p143
      %p146 = scmp.ne.s32.totalorder %s131, %s145
      %p147 = scmp.eq.s32.totalorder %s25, 0
      %p148 = por %p146, %p147
      %s150 = sadd.s32 %s149, 1
      %p153 = scmp.eq.s32.totalorder %s19, 3
      %p154 = scmp.ne.s32.totalorder %s149, %s151
      %p155 = scmp.eq.s32.totalorder %s19, 0
      %p156 = por %p154, %p155
      %p157 = scmp.ne.s32.totalorder %s149, %s151
      %p158 = scmp.eq.s32.totalorder %s24, 3
      %p159 = por %p157, %p158
      %p160 = scmp.ne.s32.totalorder %s151, %s152
      %p161 = scmp.eq.s32.totalorder %s24, 0
      %p162 = por %p160, %p161
      %p163 = scmp.ne.s32.totalorder %s151, %s152
      %p164 = scmp.eq.s32.totalorder %s25, 3
      %p165 = por %p163, %p164
      %p167 = scmp.ne.s32.totalorder %s152, %s166
      %p168 = scmp.eq.s32.totalorder %s25, 0
      %p169 = por %p167, %p168
      %s170 = ssub.s32 %s26, %s38
      %s171 = ssub.s32 %s27, %s34
      %s172 = sor.u32 %s170, %s171
      %p173 = scmp.eq.s32.totalorder %s172, 0
      %s175 = sadd.s32 %s174, 1
      %s176 = scalar_select %p173, %s174, %s175
      %p179 = pneg %p173
      %p180 = scmp.eq.s32.totalorder %s19, 3
      %p181 = por %p179, %p180
      %p182 = scmp.ne.s32.totalorder %s174, %s177
      %p183 = scmp.eq.s32.totalorder %s19, 0
      %p184 = por %p182, %p183
      %p185 = scmp.ne.s32.totalorder %s174, %s177
      %p186 = scmp.eq.s32.totalorder %s24, 3
      %p187 = por %p185, %p186
      %p188 = scmp.ne.s32.totalorder %s177, %s178
      %p189 = scmp.eq.s32.totalorder %s24, 0
      %p190 = por %p188, %p189
      %p191 = scmp.ne.s32.totalorder %s177, %s178
      %p192 = scmp.eq.s32.totalorder %s25, 3
      %p193 = por %p191, %p192
      %p195 = scmp.ne.s32.totalorder %s178, %s194
      %p196 = scmp.eq.s32.totalorder %s25, 0
      %p197 = por %p195, %p196
      %p198 = scmp.le.s32.totalorder 1, %s19
      %p199 = scmp.lt.s32.totalorder %s19, 5
      %p200 = pnand %p198, %p199
      %p201 = pneg %p200
      // Predicated region
      $region9: #{tpu_custom_call.1} parent=5 // pred_check
        _
      $region10: #{tpu_custom_call.1} parent=5 // pred_check_branch
        %203 = sbr.rel (%p200) target = $region12
      $region11: #{tpu_custom_call.1} parent=5 // pred_region
        %s204 = ssub.s32 %s19, 1
        // Predicated region
        $region13: #{tpu_custom_call.1} parent=11 // pred_check
          %p205 = pneg %p78
        $region14: #{tpu_custom_call.1} parent=11 // pred_check_branch
          %207 = sbr.rel (%p205) target = $region16
        $region15: #{tpu_custom_call.1} parent=11 // pred_region
          _
        $region16: #{tpu_custom_call.1} parent=11 // pred_fallthru
          _
        // Predicated region
        $region17: #{tpu_custom_call.1} parent=11 // pred_check
          %p208 = pneg %p99
        $region18: #{tpu_custom_call.1} parent=11 // pred_check_branch
          %210 = sbr.rel (%p208) target = $region20
        $region19: #{tpu_custom_call.1} parent=11 // pred_region
          _
        $region20: #{tpu_custom_call.1} parent=11 // pred_fallthru
          _
        // Predicated region
        $region21: #{tpu_custom_call.1} parent=11 // pred_check
          %p211 = pneg %p120
        $region22: #{tpu_custom_call.1} parent=11 // pred_check_branch
          %213 = sbr.rel (%p211) target = $region24
        $region23: #{tpu_custom_call.1} parent=11 // pred_region
          _
        $region24: #{tpu_custom_call.1} parent=11 // pred_fallthru
          _
        // Predicated region
        $region25: #{tpu_custom_call.1} parent=11 // pred_check
          %p214 = pneg %p141
        $region26: #{tpu_custom_call.1} parent=11 // pred_check_branch
          %216 = sbr.rel (%p214) target = $region28
        $region27: #{tpu_custom_call.1} parent=11 // pred_region
          _
        $region28: #{tpu_custom_call.1} parent=11 // pred_fallthru
          _
        // Predicated region
        $region29: #{tpu_custom_call.1} parent=11 // pred_check
          %p217 = pneg %p162
        $region30: #{tpu_custom_call.1} parent=11 // pred_check_branch
          %219 = sbr.rel (%p217) target = $region32
        $region31: #{tpu_custom_call.1} parent=11 // pred_region
          _
        $region32: #{tpu_custom_call.1} parent=11 // pred_fallthru
          _
      $region12: #{tpu_custom_call.1} parent=5 // pred_fallthru
        _
      %p220 = scmp.lt.s32.totalorder %s19, 4
      // Predicated region
      $region33: #{tpu_custom_call.1} parent=5 // pred_check
        %p221 = pneg %p220
      $region34: #{tpu_custom_call.1} parent=5 // pred_check_branch
        %223 = sbr.rel (%p221) target = $region36
      $region35: #{tpu_custom_call.1} parent=5 // pred_region
        // Predicated region
        $region37: #{tpu_custom_call.1} parent=35 // pred_check
          %p224 = pneg %p51
        $region38: #{tpu_custom_call.1} parent=35 // pred_check_branch
          %226 = sbr.rel (%p224) target = $region40
        $region39: #{tpu_custom_call.1} parent=35 // pred_region
          %s227 = sand.u32 %s41, 1
          %s228 = scalar_lea.sflag [#allocation4], %s227
          %s229 = sand.u32 %s41, 1
          %s230 = smul.addr %s229, 64
          %s231 = scalar_lea.vmem [#allocation3], %s230
          %s233 = ssub.s32 1024, 1024
          %234 = vsyncadd %s228, %s233
          %s235 = smul.addr %s26, 8
          %s236 = smul.addr %s235, 128
          %s237 = scalar_lea.hbm %s0, %s236
          %s238 = sshll.u32 %s231, 4
          %s239 = int_to_ptr.vmem [resolvable:$true] %s238
          %244 = dma.hbm_to_vmem [thread:$0]  %s237, 1024, %s239, %s228, 256, 256, 16
        $region40: #{tpu_custom_call.1} parent=35 // pred_fallthru
          _
      $region36: #{tpu_custom_call.1} parent=5 // pred_fallthru
        _
      %p245 = scmp.le.s32.totalorder 1, %s19
      %p246 = scmp.lt.s32.totalorder %s19, 5
      %p247 = pnand %p245, %p246
      %p248 = pneg %p247
      // Predicated region
      $region41: #{tpu_custom_call.1} parent=5 // pred_check
        _
      $region42: #{tpu_custom_call.1} parent=5 // pred_check_branch
        %250 = sbr.rel (%p247) target = $region44
      $region43: #{tpu_custom_call.1} parent=5 // pred_region
        %s251 = ssub.s32 %s19, 1
        %s252 = sand.u32 %s44, 1
        %s253 = scalar_lea.sflag [#allocation4], %s252
        %s254 = sand.u32 %s44, 1
        %s255 = smul.addr %s254, 64
        %s256 = scalar_lea.vmem [#allocation3], %s255
        // Predicated region
        $region45: #{tpu_custom_call.1} parent=43 // pred_check
          %p257 = pneg %p57
        $region46: #{tpu_custom_call.1} parent=43 // pred_check_branch
          %259 = sbr.rel (%p257) target = $region48
        $region47: #{tpu_custom_call.1} parent=43 // pred_region
          %260 = dma.done %s253, 1024
        $region48: #{tpu_custom_call.1} parent=43 // pred_fallthru
          _
        %s261 = sand.u32 %s44, 1
        %s262 = scalar_lea.sflag [#allocation4], %s261
        %s263 = sand.u32 %s44, 1
        %s264 = smul.addr %s263, 64
        %s265 = scalar_lea.vmem [#allocation3], %s264
        %p266 = pneg %p57
        %p267 = pneg %p54
        %p268 = pneg %p78
        %p269 = pneg %p75
        %p270 = pneg %p99
        %p271 = pneg %p96
        %p272 = pneg %p120
        %p273 = pneg %p117
        %p274 = pneg %p141
        %p275 = pneg %p138
        %p276 = pneg %p162
        %p277 = pneg %p159
        %p278 = pneg %p190
        %p279 = pneg %p187
        %s280 = sand.u32 %s177, 1
        %s281 = scalar_lea.sflag [#allocation5], %s280
        %s282 = sand.u32 %s177, 1
        %s283 = smul.addr %s282, 32
        %s284 = scalar_lea.vmem [#allocation6], %s283
        %s286 = smul.u32 %s29, 128
        %v287 = vld [vmem:[%s256] sm:$0xff]
        %v288 = vld [vmem:[%s256 + $0x8] sm:$0xff]
        %v289 = vld [vmem:[%s256 + $0x10] sm:$0xff]
        %v290 = vld [vmem:[%s256 + $0x18] sm:$0xff]
        %v291 = vld [vmem:[%s256 + $0x20] sm:$0xff]
        %v292 = vld [vmem:[%s256 + $0x28] sm:$0xff]
        %v293 = vld [vmem:[%s256 + $0x30] sm:$0xff]
        %v294 = vld [vmem:[%s256 + $0x38] sm:$0xff]
        %v295 = vpack.c.bf16 %v289, %v287
        %v296 = vpack.c.bf16 %v290, %v288
        %v297 = vpack.c.bf16 %v293, %v291
        %v298 = vpack.c.bf16 %v294, %v292
        %s299 = sshra.s32 %s286, 7
        %s300 = sand.u32 %s286, 127
        %s301 = smul.addr %s299, 8
        %s302 = scalar_lea.vmem %s256, %s301 [#allocation3]
        %v303 = vld [vmem:[%s302] sm:$0xff]
        %v304 = vld [vmem:[%s302 + $0x10] sm:$0xff]
        %v305 = vld [vmem:[%s302 + $0x20] sm:$0xff]
        %v306 = vld [vmem:[%s302 + $0x30] sm:$0xff]
        %v307 = vld [vmem:[%s3] sm:$0xf]
        %v308 = vld [vmem:[%s3 + $0x4] sm:$0xf]
        %v309 = vld [vmem:[%s3 + $0x8] sm:$0xf]
        %v310 = vld [vmem:[%s3 + $0xc] sm:$0xf]
        %v311 = vld [vmem:[%s3 + $0x10] sm:$0xf]
        %v312 = vld [vmem:[%s4] sm:$0xff]
        %v313 = vld [vmem:[%s4 + $0x8] sm:$0xff]
        %v314 = vld [vmem:[%s4 + $0x10] sm:$0xff]
        %v315 = vld [vmem:[%s4 + $0x18] sm:$0xff]
        %v316 = vld [vmem:[%s4 + $0x20] sm:$0xff]
        %318 = vset.pattern.permute.xlu0 0
        %319 = vperm.xlu0 %318, %v312
        %v320 = vpop.permute.xlu0 %319
        %323 = vset.pattern.permute.xlu0 0
        %324 = vperm.xlu0 %323, %v313
        %v325 = vpop.permute.xlu0 %324
        %328 = vset.pattern.permute.xlu0 0
        %329 = vperm.xlu0 %328, %v314
        %v330 = vpop.permute.xlu0 %329
        %333 = vset.pattern.permute.xlu0 0
        %334 = vperm.xlu0 %333, %v315
        %v335 = vpop.permute.xlu0 %334
        %338 = vset.pattern.permute.xlu0 0
        %339 = vperm.xlu0 %338, %v316
        %v340 = vpop.permute.xlu0 %339
        %v347 = vunpack.c.l.b16 %v307
        %v348 = vunpack.c.l.b16 %v308
        %v349 = vunpack.c.l.b16 %v309
        %v350 = vunpack.c.l.b16 %v310
        %v351 = vunpack.c.l.b16 %v311
        %v352 = vpack.c.b16 %v348, %v347
        %v353 = vpack.c.b16 %v350, %v349
        %v354 = vpack.c.b16 %v351, %v351
        %vm355 = vcmask 261120
        %v357 = vsel %vm355, %v352, 0
        %v360 = vsel %vm355, %v353, 0
        %v363 = vsel %vm355, %v354, 0
        %365 = vmatprep.subr.bf16.mxu0 0
        %366 = vmatpush1.bf16.msra.mxu0 0
        %367 = vmatprep.subr.bf16.mxu0 0
        %368 = vmatpush1.bf16.msra.mxu0 0
        %369 = vmatprep.subr.bf16.mxu0 0
        %370 = vmatpush1.bf16.msra.mxu0 0
        %371 = vmatprep.subr.bf16.mxu0 0
        %372 = vmatpush1.bf16.msra.mxu0 0
        %373 = vmatprep.subr.bf16.mxu0 0
        %374 = vmatpush1.bf16.msra.mxu0 0
        %375 = vmatprep.subr.bf16.mxu0 0
        %376 = vmatpush1.bf16.msra.mxu0 0
        %377 = vmatprep.subr.bf16.mxu0 %v298
        %378 = vmatpush1.bf16.msra.mxu0 %v297
        %379 = vmatprep.subr.bf16.mxu0 %v296
        %380 = vmatpush1.bf16.msra.mxu0 %v295
        %381 = vmatprep.subr.bf16.mxu0 0
        %382 = vmatpush2.bf16.msra.mxu0 0
        %383 = vmatprep.subr.bf16.mxu0 0
        %384 = vmatpush2.bf16.msra.mxu0 0
        %385 = vmatprep.subr.bf16.mxu0 0
        %386 = vmatpush2.bf16.msra.mxu0 0
        %387 = vmatprep.subr.bf16.mxu0 0
        %388 = vmatpush2.bf16.msra.mxu0 0
        %389 = vmatprep.subr.bf16.mxu0 0
        %390 = vmatpush2.bf16.msra.mxu0 0
        %391 = vmatprep.subr.bf16.mxu0 0
        %392 = vmatpush2.bf16.msra.mxu0 0
        %393 = vmatprep.subr.bf16.mxu0 0
        %394 = vmatpush2.bf16.msra.mxu0 0
        %395 = vmatprep.subr.bf16.mxu0 0
        %396 = vmatpush2.bf16.msra.mxu0 0
        %397 = vmatprep.mubr.bf16.mxu0 0
        %398 = vmatmul.mubr.bf16.gmra.mxu0 %v357
        %v399 = vpop.f32.mrf.mxu0
        %v400 = vadd.f32 %v320, %v399
        %v401 = vpop.f32.mrf.mxu0
        %v402 = vadd.f32 %v320, %v401
        %v403 = vpop.f32.mrf.mxu0
        %v404 = vadd.f32 %v325, %v403
        %v405 = vpop.f32.mrf.mxu0
        %v406 = vadd.f32 %v325, %v405
        %407 = vmatprep.mubr.bf16.mxu0 0
        %408 = vmatmul.mubr.bf16.gmra.mxu0 %v360
        %v409 = vpop.f32.mrf.mxu0
        %v410 = vadd.f32 %v330, %v409
        %v411 = vpop.f32.mrf.mxu0
        %v412 = vadd.f32 %v330, %v411
        %v413 = vpop.f32.mrf.mxu0
        %v414 = vadd.f32 %v335, %v413
        %v415 = vpop.f32.mrf.mxu0
        %v416 = vadd.f32 %v335, %v415
        %417 = vmatprep.mubr.bf16.mxu0 0
        %418 = vmatmul.mubr.bf16.gmra.mxu0 %v363
        %v419 = vpop.f32.mrf.mxu0
        %v420 = vadd.f32 %v340, %v419
        %v421 = vpop.f32.mrf.mxu0
        %v422 = vadd.f32 %v340, %v421
        %v423 = vpop.f32.mrf.mxu0
        %v424 = vpop.f32.mrf.mxu0
        %425 = vdwg.mxu0
        %v426 = vpack.c.bf16 %v400, %v400
        %v427 = vpack.c.bf16 %v402, %v402
        %v428 = vpack.c.bf16 %v410, %v404
        %v429 = vpack.c.bf16 %v412, %v406
        %v430 = vpack.c.bf16 %v420, %v414
        %v431 = vpack.c.bf16 %v422, %v416
        %v432 = vld [vmem:[%s1] sm:$0xf]
        %v433 = vpack.c.bf16 %v304, %v303
        %v434 = vpack.c.bf16 %v306, %v305
        %v435 = vld [vmem:[%s2] sm:$0xff]
        %437 = vset.pattern.permute.xlu0 0
        %438 = vperm.xlu0 %437, %v435
        %v439 = vpop.permute.xlu0 %438
        %v442 = vsel %vm355, %v432, 0
        %444 = vmatprep.subr.bf16.mxu0 0
        %445 = vmatpush1.bf16.msra.mxu0 0
        %446 = vmatprep.subr.bf16.mxu0 0
        %447 = vmatpush1.bf16.msra.mxu0 0
        %448 = vmatprep.subr.bf16.mxu0 0
        %449 = vmatpush1.bf16.msra.mxu0 0
        %450 = vmatprep.subr.bf16.mxu0 0
        %451 = vmatpush1.bf16.msra.mxu0 0
        %452 = vmatprep.subr.bf16.mxu0 0
        %453 = vmatpush1.bf16.msra.mxu0 0
        %454 = vmatprep.subr.bf16.mxu0 0
        %455 = vmatpush1.bf16.msra.mxu0 0
        %456 = vmatprep.subr.bf16.mxu0 0
        %457 = vmatpush1.bf16.msra.mxu0 %v434
        %458 = vmatprep.subr.bf16.mxu0 0
        %459 = vmatpush1.bf16.msra.mxu0 %v433
        %460 = vmatprep.subr.bf16.mxu0 0
        %461 = vmatpush2.bf16.msra.mxu0 0
        %462 = vmatprep.subr.bf16.mxu0 0
        %463 = vmatpush2.bf16.msra.mxu0 0
        %464 = vmatprep.subr.bf16.mxu0 0
        %465 = vmatpush2.bf16.msra.mxu0 0
        %466 = vmatprep.subr.bf16.mxu0 0
        %467 = vmatpush2.bf16.msra.mxu0 0
        %468 = vmatprep.subr.bf16.mxu0 0
        %469 = vmatpush2.bf16.msra.mxu0 0
        %470 = vmatprep.subr.bf16.mxu0 0
        %471 = vmatpush2.bf16.msra.mxu0 0
        %472 = vmatprep.subr.bf16.mxu0 0
        %473 = vmatpush2.bf16.msra.mxu0 0
        %474 = vmatprep.subr.bf16.mxu0 0
        %475 = vmatpush2.bf16.msra.mxu0 0
        %476 = vmatprep.mubr.bf16.mxu0 0
        %477 = vmatmul.mubr.bf16.gmra.mxu0 %v442
        %v478 = vpop.f32.mrf.mxu0
        %v479 = vadd.f32 %v439, %v478
        %v480 = vpop.f32.mrf.mxu0
        %v481 = vpop.f32.mrf.mxu0
        %v482 = vpop.f32.mrf.mxu0
        %483 = vdwg.mxu0
        %v484 = vpack.c.bf16 %v479, %v479
        %485 = vxpose.xlu0.c.b16.start [1/8] %v426, 128
        %486 = vxpose.xlu0.c.b16.cont [2/8] 0, 128
        %487 = vxpose.xlu0.c.b16.cont [3/8] 0, 128
        %488 = vxpose.xlu0.c.b16.cont [4/8] 0, 128
        %489 = vxpose.xlu0.c.b16.cont [5/8] 0, 128
        %490 = vxpose.xlu0.c.b16.cont [6/8] 0, 128
        %491 = vxpose.xlu0.c.b16.cont [7/8] 0, 128
        %492 = vxpose.xlu0.c.b16.end [8/8] 0, 128
        %v493 = vpop.trf.xlu0
        %v494 = vpop.trf.xlu0
        %v495 = vpop.trf.xlu0
        %v496 = vpop.trf.xlu0
        %v497 = vpop.trf.xlu0
        %v498 = vpop.trf.xlu0
        %v499 = vpop.trf.xlu0
        %v500 = vpop.trf.xlu0
        %501 = vxpose.xlu0.c.b16.start [1/8] %v427, 128
        %502 = vxpose.xlu0.c.b16.cont [2/8] 0, 128
        %503 = vxpose.xlu0.c.b16.cont [3/8] 0, 128
        %504 = vxpose.xlu0.c.b16.cont [4/8] 0, 128
        %505 = vxpose.xlu0.c.b16.cont [5/8] 0, 128
        %506 = vxpose.xlu0.c.b16.cont [6/8] 0, 128
        %507 = vxpose.xlu0.c.b16.cont [7/8] 0, 128
        %508 = vxpose.xlu0.c.b16.end [8/8] 0, 128
        %v509 = vpop.trf.xlu0
        %v510 = vpop.trf.xlu0
        %v511 = vpop.trf.xlu0
        %v512 = vpop.trf.xlu0
        %v513 = vpop.trf.xlu0
        %v514 = vpop.trf.xlu0
        %v515 = vpop.trf.xlu0
        %v516 = vpop.trf.xlu0
        %vm517 = vcmask 64512
        %v519 = vsel %vm517, %v493, 0
        %v522 = vsel %vm517, %v494, 0
        %v525 = vsel %vm517, %v495, 0
        %v528 = vsel %vm517, %v496, 0
        %v531 = vsel %vm517, %v497, 0
        %v534 = vsel %vm517, %v498, 0
        %v537 = vsel %vm517, %v499, 0
        %v540 = vsel %vm517, %v500, 0
        %v543 = vsel %vm517, %v509, 0
        %v546 = vsel %vm517, %v510, 0
        %v549 = vsel %vm517, %v511, 0
        %v552 = vsel %vm517, %v512, 0
        %v555 = vsel %vm517, %v513, 0
        %v558 = vsel %vm517, %v514, 0
        %v561 = vsel %vm517, %v515, 0
        %v564 = vsel %vm517, %v516, 0
        %vm566 = vcmask 1043456
        %v568 = vsel %vm566, %v484, 0
        %570 = vmatprep.subr.bf16.mxu0 0
        %571 = vmatpush1.bf16.msra.mxu0 0
        %572 = vmatprep.subr.bf16.mxu0 0
        %573 = vmatpush1.bf16.msra.mxu0 0
        %574 = vmatprep.subr.bf16.mxu0 0
        %575 = vmatpush1.bf16.msra.mxu0 0
        %576 = vmatprep.subr.bf16.mxu0 0
        %577 = vmatpush1.bf16.msra.mxu0 0
        %578 = vmatprep.subr.bf16.mxu0 0
        %579 = vmatpush1.bf16.msra.mxu0 0
        %580 = vmatprep.subr.bf16.mxu0 0
        %581 = vmatpush1.bf16.msra.mxu0 0
        %582 = vmatprep.subr.bf16.mxu0 0
        %583 = vmatpush1.bf16.msra.mxu0 0
        %584 = vmatprep.subr.bf16.mxu0 0
        %585 = vmatpush1.bf16.msra.mxu0 %v568
        %586 = vmatprep.subr.bf16.mxu0 0
        %587 = vmatpush2.bf16.msra.mxu0 0
        %588 = vmatprep.subr.bf16.mxu0 0
        %589 = vmatpush2.bf16.msra.mxu0 0
        %590 = vmatprep.subr.bf16.mxu0 0
        %591 = vmatpush2.bf16.msra.mxu0 0
        %592 = vmatprep.subr.bf16.mxu0 0
        %593 = vmatpush2.bf16.msra.mxu0 0
        %594 = vmatprep.subr.bf16.mxu0 0
        %595 = vmatpush2.bf16.msra.mxu0 0
        %596 = vmatprep.subr.bf16.mxu0 0
        %597 = vmatpush2.bf16.msra.mxu0 0
        %598 = vmatprep.subr.bf16.mxu0 0
        %599 = vmatpush2.bf16.msra.mxu0 0
        %600 = vmatprep.subr.bf16.mxu0 0
        %601 = vmatpush2.bf16.msra.mxu0 0
        %602 = vmatprep.mubr.bf16.mxu0 0
        %603 = vmatmul.mubr.bf16.gmra.mxu0 %v519
        %v604 = vpop.f32.mrf.mxu0
        %v605 = vadd.f32 0.0, %v604
        %v606 = vpop.f32.mrf.mxu0
        %v607 = vpop.f32.mrf.mxu0
        %v608 = vadd.f32 0.0, %v607
        %v609 = vpop.f32.mrf.mxu0
        %610 = vmatprep.mubr.bf16.mxu0 0
        %611 = vmatmul.mubr.bf16.gmra.mxu0 %v522
        %v612 = vpop.f32.mrf.mxu0
        %v613 = vadd.f32 0.0, %v612
        %v614 = vpop.f32.mrf.mxu0
        %v615 = vpop.f32.mrf.mxu0
        %v616 = vadd.f32 0.0, %v615
        %v617 = vpop.f32.mrf.mxu0
        %618 = vmatprep.mubr.bf16.mxu0 0
        %619 = vmatmul.mubr.bf16.gmra.mxu0 %v525
        %v620 = vpop.f32.mrf.mxu0
        %v621 = vadd.f32 0.0, %v620
        %v622 = vpop.f32.mrf.mxu0
        %v623 = vpop.f32.mrf.mxu0
        %v624 = vadd.f32 0.0, %v623
        %v625 = vpop.f32.mrf.mxu0
        %626 = vmatprep.mubr.bf16.mxu0 0
        %627 = vmatmul.mubr.bf16.gmra.mxu0 %v528
        %v628 = vpop.f32.mrf.mxu0
        %v629 = vadd.f32 0.0, %v628
        %v630 = vpop.f32.mrf.mxu0
        %v631 = vpop.f32.mrf.mxu0
        %v632 = vadd.f32 0.0, %v631
        %v633 = vpop.f32.mrf.mxu0
        %634 = vmatprep.mubr.bf16.mxu0 0
        %635 = vmatmul.mubr.bf16.gmra.mxu0 %v531
        %v636 = vpop.f32.mrf.mxu0
        %v637 = vadd.f32 0.0, %v636
        %v638 = vpop.f32.mrf.mxu0
        %v639 = vpop.f32.mrf.mxu0
        %v640 = vadd.f32 0.0, %v639
        %v641 = vpop.f32.mrf.mxu0
        %642 = vmatprep.mubr.bf16.mxu0 0
        %643 = vmatmul.mubr.bf16.gmra.mxu0 %v534
        %v644 = vpop.f32.mrf.mxu0
        %v645 = vadd.f32 0.0, %v644
        %v646 = vpop.f32.mrf.mxu0
        %v647 = vpop.f32.mrf.mxu0
        %v648 = vadd.f32 0.0, %v647
        %v649 = vpop.f32.mrf.mxu0
        %650 = vmatprep.mubr.bf16.mxu0 0
        %651 = vmatmul.mubr.bf16.gmra.mxu0 %v537
        %v652 = vpop.f32.mrf.mxu0
        %v653 = vadd.f32 0.0, %v652
        %v654 = vpop.f32.mrf.mxu0
        %v655 = vpop.f32.mrf.mxu0
        %v656 = vadd.f32 0.0, %v655
        %v657 = vpop.f32.mrf.mxu0
        %658 = vmatprep.mubr.bf16.mxu0 0
        %659 = vmatmul.mubr.bf16.gmra.mxu0 %v540
        %v660 = vpop.f32.mrf.mxu0
        %v661 = vadd.f32 0.0, %v660
        %v662 = vpop.f32.mrf.mxu0
        %v663 = vpop.f32.mrf.mxu0
        %v664 = vadd.f32 0.0, %v663
        %v665 = vpop.f32.mrf.mxu0
        %666 = vmatprep.mubr.bf16.mxu0 0
        %667 = vmatmul.mubr.bf16.gmra.mxu0 %v543
        %v668 = vpop.f32.mrf.mxu0
        %v669 = vadd.f32 0.0, %v668
        %v670 = vpop.f32.mrf.mxu0
        %v671 = vpop.f32.mrf.mxu0
        %v672 = vadd.f32 0.0, %v671
        %v673 = vpop.f32.mrf.mxu0
        %674 = vmatprep.mubr.bf16.mxu0 0
        %675 = vmatmul.mubr.bf16.gmra.mxu0 %v546
        %v676 = vpop.f32.mrf.mxu0
        %v677 = vadd.f32 0.0, %v676
        %v678 = vpop.f32.mrf.mxu0
        %v679 = vpop.f32.mrf.mxu0
        %v680 = vadd.f32 0.0, %v679
        %v681 = vpop.f32.mrf.mxu0
        %682 = vmatprep.mubr.bf16.mxu0 0
        %683 = vmatmul.mubr.bf16.gmra.mxu0 %v549
        %v684 = vpop.f32.mrf.mxu0
        %v685 = vadd.f32 0.0, %v684
        %v686 = vpop.f32.mrf.mxu0
        %v687 = vpop.f32.mrf.mxu0
        %v688 = vadd.f32 0.0, %v687
        %v689 = vpop.f32.mrf.mxu0
        %690 = vmatprep.mubr.bf16.mxu0 0
        %691 = vmatmul.mubr.bf16.gmra.mxu0 %v552
        %v692 = vpop.f32.mrf.mxu0
        %v693 = vadd.f32 0.0, %v692
        %v694 = vpop.f32.mrf.mxu0
        %v695 = vpop.f32.mrf.mxu0
        %v696 = vadd.f32 0.0, %v695
        %v697 = vpop.f32.mrf.mxu0
        %698 = vmatprep.mubr.bf16.mxu0 0
        %699 = vmatmul.mubr.bf16.gmra.mxu0 %v555
        %v700 = vpop.f32.mrf.mxu0
        %v701 = vadd.f32 0.0, %v700
        %v702 = vpop.f32.mrf.mxu0
        %v703 = vpop.f32.mrf.mxu0
        %v704 = vadd.f32 0.0, %v703
        %v705 = vpop.f32.mrf.mxu0
        %706 = vmatprep.mubr.bf16.mxu0 0
        %707 = vmatmul.mubr.bf16.gmra.mxu0 %v558
        %v708 = vpop.f32.mrf.mxu0
        %v709 = vadd.f32 0.0, %v708
        %v710 = vpop.f32.mrf.mxu0
        %v711 = vpop.f32.mrf.mxu0
        %v712 = vadd.f32 0.0, %v711
        %v713 = vpop.f32.mrf.mxu0
        %714 = vmatprep.mubr.bf16.mxu0 0
        %715 = vmatmul.mubr.bf16.gmra.mxu0 %v561
        %v716 = vpop.f32.mrf.mxu0
        %v717 = vadd.f32 0.0, %v716
        %v718 = vpop.f32.mrf.mxu0
        %v719 = vpop.f32.mrf.mxu0
        %v720 = vadd.f32 0.0, %v719
        %v721 = vpop.f32.mrf.mxu0
        %722 = vmatprep.mubr.bf16.mxu0 0
        %723 = vmatmul.mubr.bf16.gmra.mxu0 %v564
        %v724 = vpop.f32.mrf.mxu0
        %v725 = vadd.f32 0.0, %v724
        %v726 = vpop.f32.mrf.mxu0
        %v727 = vpop.f32.mrf.mxu0
        %v728 = vadd.f32 0.0, %v727
        %v729 = vpop.f32.mrf.mxu0
        %730 = vdwg.mxu0
        %v731 = vmax.f32 %v605, %v621
        %v732 = vmax.f32 %v608, %v624
        %v733 = vmax.f32 %v613, %v629
        %v734 = vmax.f32 %v616, %v632
        %v735 = vmax.f32 %v731, %v637
        %v736 = vmax.f32 %v732, %v640
        %v737 = vmax.f32 %v733, %v645
        %v738 = vmax.f32 %v734, %v648
        %v739 = vmax.f32 %v735, %v653
        %v740 = vmax.f32 %v736, %v656
        %v741 = vmax.f32 %v737, %v661
        %v742 = vmax.f32 %v738, %v664
        %v743 = vmax.f32 %v739, %v669
        %v744 = vmax.f32 %v740, %v672
        %v745 = vmax.f32 %v741, %v677
        %v746 = vmax.f32 %v742, %v680
        %v747 = vmax.f32 %v743, %v685
        %v748 = vmax.f32 %v744, %v688
        %v749 = vmax.f32 %v745, %v693
        %v750 = vmax.f32 %v746, %v696
        %v751 = vmax.f32 %v747, %v701
        %v752 = vmax.f32 %v748, %v704
        %v753 = vmax.f32 %v749, %v709
        %v754 = vmax.f32 %v750, %v712
        %v755 = vmax.f32 %v751, %v717
        %v756 = vmax.f32 %v752, %v720
        %v757 = vmax.f32 %v753, %v725
        %v758 = vmax.f32 %v754, %v728
        %v759 = vmax.f32 %v755, %v756
        %v760 = vmax.f32 %v757, %v758
        %v761 = vmax.f32 %v759, %v760
        %v762 = vrot.slane %v761, 4
        %v763 = vmax.f32 %v761, %v762
        %v764 = vrot.slane %v763, 2
        %v765 = vmax.f32 %v763, %v764
        %v766 = vrot.slane %v765, 1
        %v767 = vmax.f32 %v765, %v766
        %v768 = vsub.f32 %v605, %v767
        %v769 = vsub.f32 %v608, %v767
        %v770 = vsub.f32 %v613, %v767
        %v771 = vsub.f32 %v616, %v767
        %v772 = vsub.f32 %v621, %v767
        %v773 = vsub.f32 %v624, %v767
        %v774 = vsub.f32 %v629, %v767
        %v775 = vsub.f32 %v632, %v767
        %v776 = vsub.f32 %v637, %v767
        %v777 = vsub.f32 %v640, %v767
        %v778 = vsub.f32 %v645, %v767
        %v779 = vsub.f32 %v648, %v767
        %v780 = vsub.f32 %v653, %v767
        %v781 = vsub.f32 %v656, %v767
        %v782 = vsub.f32 %v661, %v767
        %v783 = vsub.f32 %v664, %v767
        %v784 = vsub.f32 %v669, %v767
        %v785 = vsub.f32 %v672, %v767
        %v786 = vsub.f32 %v677, %v767
        %v787 = vsub.f32 %v680, %v767
        %v788 = vsub.f32 %v685, %v767
        %v789 = vsub.f32 %v688, %v767
        %v790 = vsub.f32 %v693, %v767
        %v791 = vsub.f32 %v696, %v767
        %v792 = vsub.f32 %v701, %v767
        %v793 = vsub.f32 %v704, %v767
        %v794 = vsub.f32 %v709, %v767
        %v795 = vsub.f32 %v712, %v767
        %v796 = vsub.f32 %v717, %v767
        %v797 = vsub.f32 %v720, %v767
        %v798 = vsub.f32 %v725, %v767
        %v799 = vsub.f32 %v728, %v767
        %v800 = vmul.f32 %v768, 1.442695
        %v801 = vpow.pop %v800
        %v802 = vmul.f32 %v769, 1.442695
        %v803 = vpow.pop %v802
        %v804 = vmul.f32 %v770, 1.442695
        %v805 = vpow.pop %v804
        %v806 = vmul.f32 %v771, 1.442695
        %v807 = vpow.pop %v806
        %v808 = vmul.f32 %v772, 1.442695
        %v809 = vpow.pop %v808
        %v810 = vmul.f32 %v773, 1.442695
        %v811 = vpow.pop %v810
        %v812 = vmul.f32 %v774, 1.442695
        %v813 = vpow.pop %v812
        %v814 = vmul.f32 %v775, 1.442695
        %v815 = vpow.pop %v814
        %v816 = vmul.f32 %v776, 1.442695
        %v817 = vpow.pop %v816
        %v818 = vmul.f32 %v777, 1.442695
        %v819 = vpow.pop %v818
        %v820 = vmul.f32 %v778, 1.442695
        %v821 = vpow.pop %v820
        %v822 = vmul.f32 %v779, 1.442695
        %v823 = vpow.pop %v822
        %v824 = vmul.f32 %v780, 1.442695
        %v825 = vpow.pop %v824
        %v826 = vmul.f32 %v781, 1.442695
        %v827 = vpow.pop %v826
        %v828 = vmul.f32 %v782, 1.442695
        %v829 = vpow.pop %v828
        %v830 = vmul.f32 %v783, 1.442695
        %v831 = vpow.pop %v830
        %v832 = vmul.f32 %v784, 1.442695
        %v833 = vpow.pop %v832
        %v834 = vmul.f32 %v785, 1.442695
        %v835 = vpow.pop %v834
        %v836 = vmul.f32 %v786, 1.442695
        %v837 = vpow.pop %v836
        %v838 = vmul.f32 %v787, 1.442695
        %v839 = vpow.pop %v838
        %v840 = vmul.f32 %v788, 1.442695
        %v841 = vpow.pop %v840
        %v842 = vmul.f32 %v789, 1.442695
        %v843 = vpow.pop %v842
        %v844 = vmul.f32 %v790, 1.442695
        %v845 = vpow.pop %v844
        %v846 = vmul.f32 %v791, 1.442695
        %v847 = vpow.pop %v846
        %v848 = vmul.f32 %v792, 1.442695
        %v849 = vpow.pop %v848
        %v850 = vmul.f32 %v793, 1.442695
        %v851 = vpow.pop %v850
        %v852 = vmul.f32 %v794, 1.442695
        %v853 = vpow.pop %v852
        %v854 = vmul.f32 %v795, 1.442695
        %v855 = vpow.pop %v854
        %v856 = vmul.f32 %v796, 1.442695
        %v857 = vpow.pop %v856
        %v858 = vmul.f32 %v797, 1.442695
        %v859 = vpow.pop %v858
        %v860 = vmul.f32 %v798, 1.442695
        %v861 = vpow.pop %v860
        %v862 = vmul.f32 %v799, 1.442695
        %v863 = vpow.pop %v862
        %v864 = vadd.f32 %v801, %v803
        %v865 = vadd.f32 %v864, %v805
        %v866 = vadd.f32 %v865, %v807
        %v867 = vadd.f32 %v866, %v809
        %v868 = vadd.f32 %v867, %v811
        %v869 = vadd.f32 %v868, %v813
        %v870 = vadd.f32 %v869, %v815
        %v871 = vadd.f32 %v870, %v817
        %v872 = vadd.f32 %v871, %v819
        %v873 = vadd.f32 %v872, %v821
        %v874 = vadd.f32 %v873, %v823
        %v875 = vadd.f32 %v874, %v825
        %v876 = vadd.f32 %v875, %v827
        %v877 = vadd.f32 %v876, %v829
        %v878 = vadd.f32 %v877, %v831
        %v879 = vadd.f32 %v878, %v833
        %v880 = vadd.f32 %v879, %v835
        %v881 = vadd.f32 %v880, %v837
        %v882 = vadd.f32 %v881, %v839
        %v883 = vadd.f32 %v882, %v841
        %v884 = vadd.f32 %v883, %v843
        %v885 = vadd.f32 %v884, %v845
        %v886 = vadd.f32 %v885, %v847
        %v887 = vadd.f32 %v886, %v849
        %v888 = vadd.f32 %v887, %v851
        %v889 = vadd.f32 %v888, %v853
        %v890 = vadd.f32 %v889, %v855
        %v891 = vadd.f32 %v890, %v857
        %v892 = vadd.f32 %v891, %v859
        %v893 = vadd.f32 %v892, %v861
        %v894 = vadd.f32 %v893, %v863
        %v895 = vrot.slane %v894, 4
        %v896 = vadd.f32 %v894, %v895
        %v897 = vrot.slane %v896, 2
        %v898 = vadd.f32 %v896, %v897
        %v899 = vrot.slane %v898, 1
        %v900 = vadd.f32 %v898, %v899
        %v901 = vpack.c.bf16 %v803, %v801
        %v902 = vpack.c.bf16 %v807, %v805
        %v903 = vpack.c.bf16 %v811, %v809
        %v904 = vpack.c.bf16 %v815, %v813
        %v905 = vpack.c.bf16 %v819, %v817
        %v906 = vpack.c.bf16 %v823, %v821
        %v907 = vpack.c.bf16 %v827, %v825
        %v908 = vpack.c.bf16 %v831, %v829
        %v909 = vpack.c.bf16 %v835, %v833
        %v910 = vpack.c.bf16 %v839, %v837
        %v911 = vpack.c.bf16 %v843, %v841
        %v912 = vpack.c.bf16 %v847, %v845
        %v913 = vpack.c.bf16 %v851, %v849
        %v914 = vpack.c.bf16 %v855, %v853
        %v915 = vpack.c.bf16 %v859, %v857
        %v916 = vpack.c.bf16 %v863, %v861
        %917 = vmatprep.subr.bf16.mxu0 0
        %918 = vmatpush1.bf16.msra.mxu0 %v908
        %919 = vmatprep.subr.bf16.mxu0 0
        %920 = vmatpush1.bf16.msra.mxu0 %v907
        %921 = vmatprep.subr.bf16.mxu0 0
        %922 = vmatpush1.bf16.msra.mxu0 %v906
        %923 = vmatprep.subr.bf16.mxu0 0
        %924 = vmatpush1.bf16.msra.mxu0 %v905
        %925 = vmatprep.subr.bf16.mxu0 0
        %926 = vmatpush1.bf16.msra.mxu0 %v904
        %927 = vmatprep.subr.bf16.mxu0 0
        %928 = vmatpush1.bf16.msra.mxu0 %v903
        %929 = vmatprep.subr.bf16.mxu0 0
        %930 = vmatpush1.bf16.msra.mxu0 %v902
        %931 = vmatprep.subr.bf16.mxu0 0
        %932 = vmatpush1.bf16.msra.mxu0 %v901
        %933 = vmatprep.subr.bf16.mxu0 0
        %934 = vmatpush2.bf16.msra.mxu0 %v916
        %935 = vmatprep.subr.bf16.mxu0 0
        %936 = vmatpush2.bf16.msra.mxu0 %v915
        %937 = vmatprep.subr.bf16.mxu0 0
        %938 = vmatpush2.bf16.msra.mxu0 %v914
        %939 = vmatprep.subr.bf16.mxu0 0
        %940 = vmatpush2.bf16.msra.mxu0 %v913
        %941 = vmatprep.subr.bf16.mxu0 0
        %942 = vmatpush2.bf16.msra.mxu0 %v912
        %943 = vmatprep.subr.bf16.mxu0 0
        %944 = vmatpush2.bf16.msra.mxu0 %v911
        %945 = vmatprep.subr.bf16.mxu0 0
        %946 = vmatpush2.bf16.msra.mxu0 %v910
        %947 = vmatprep.subr.bf16.mxu0 0
        %948 = vmatpush2.bf16.msra.mxu0 %v909
        %949 = vmatprep.mubr.bf16.mxu0 %v429
        %950 = vmatmul.mubr.bf16.gmra.mxu0 %v428
        %v951 = vpop.f32.mrf.mxu0
        %v952 = vadd.f32 0.0, %v951
        %v953 = vpop.f32.mrf.mxu0
        %v954 = vpop.f32.mrf.mxu0
        %v955 = vadd.f32 0.0, %v954
        %v956 = vpop.f32.mrf.mxu0
        %957 = vmatprep.mubr.bf16.mxu0 %v431
        %958 = vmatmul.mubr.bf16.gmra.mxu0 %v430
        %v959 = vpop.f32.mrf.mxu0
        %v960 = vadd.f32 0.0, %v959
        %v961 = vpop.f32.mrf.mxu0
        %v962 = vpop.f32.mrf.mxu0
        %v963 = vadd.f32 0.0, %v962
        %v964 = vpop.f32.mrf.mxu0
        %965 = vdwg.mxu0
        %s966 = sld [smem:[#allocation2]]
        %v967 = vrcp.pop %v900
        %v968 = vstv %s966
        %v969 = vmul.f32 %v968, %v967
        %v970 = vmul.f32 %v952, %v969
        %v971 = vmul.f32 %v955, %v969
        %v972 = vmul.f32 %v960, %v969
        %v973 = vmul.f32 %v963, %v969
        %v974 = vadd.f32 %v970, %v303
        %v975 = vadd.f32 %v971, %v304
        %v976 = vadd.f32 %v972, %v305
        %v977 = vadd.f32 %v973, %v306
        %978 = vst [vmem:[%s284] sm:$0xff] %v974
        %979 = vst [vmem:[%s284 + $0x8] sm:$0xff] %v975
        %980 = vst [vmem:[%s284 + $0x10] sm:$0xff] %v976
        %981 = vst [vmem:[%s284 + $0x18] sm:$0xff] %v977
        %s982 = sand.u32 %s177, 1
        %s983 = scalar_lea.sflag [#allocation5], %s982
        %s984 = sand.u32 %s177, 1
        %s985 = smul.addr %s984, 32
        %s986 = scalar_lea.vmem [#allocation6], %s985
        // Predicated region
        $region49: #{tpu_custom_call.1} parent=43 // pred_check
          %p987 = pneg %p187
        $region50: #{tpu_custom_call.1} parent=43 // pred_check_branch
          %989 = sbr.rel (%p987) target = $region52
        $region51: #{tpu_custom_call.1} parent=43 // pred_region
          %s991 = ssub.s32 512, 512
          %992 = vsyncadd %s983, %s991
          %s993 = smul.addr %s28, 8
          %s994 = sadd.s32 %s29, %s993
          %s995 = smul.addr %s994, 128
          %s996 = scalar_lea.hbm %s6, %s995
          %s997 = sshll.u32 %s986, 4
          %s998 = int_to_ptr.vmem [resolvable:$true] %s997
          %1003 = dma.vmem_to_hbm [thread:$0]  %s998, 512, %s996, %s983, 128, 256, 8
        $region52: #{tpu_custom_call.1} parent=43 // pred_fallthru
          _
      $region44: #{tpu_custom_call.1} parent=5 // pred_fallthru
        _
      %p1004 = scmp.le.s32.totalorder 2, %s19
      // Predicated region
      $region53: #{tpu_custom_call.1} parent=5 // pred_check
        %p1005 = pneg %p1004
      $region54: #{tpu_custom_call.1} parent=5 // pred_check_branch
        %1007 = sbr.rel (%p1005) target = $region56
      $region55: #{tpu_custom_call.1} parent=5 // pred_region
        %s1008 = ssub.s32 %s19, 2
        // Predicated region
        $region57: #{tpu_custom_call.1} parent=55 // pred_check
          %p1009 = pneg %p193
        $region58: #{tpu_custom_call.1} parent=55 // pred_check_branch
          %1011 = sbr.rel (%p1009) target = $region60
        $region59: #{tpu_custom_call.1} parent=55 // pred_region
          %s1012 = sand.u32 %s178, 1
          %s1013 = scalar_lea.sflag [#allocation5], %s1012
          %s1014 = sand.u32 %s178, 1
          %s1015 = smul.addr %s1014, 32
          %s1016 = scalar_lea.vmem [#allocation6], %s1015
          %1017 = dma.done %s1013, 512
        $region60: #{tpu_custom_call.1} parent=55 // pred_fallthru
          _
      $region56: #{tpu_custom_call.1} parent=5 // pred_fallthru
        _
    $region6: #{tpu_custom_call.1} parent=1 // loop_footer
      %s23 = sadd.s32 1, %s19
    $region7: #{tpu_custom_call.1} parent=1 // loop_footer_branch
      %18 = sbr.rel target = $region3
    $region8: #{tpu_custom_call.1} parent=1 // loop_exit
      _
    %1018 = vsyncpa [#allocation4], 1
    %s1019 = scalar_lea.sflag [#allocation4], 1
    %1020 = vsyncpa %s1019, 1
    %1021 = vsyncpa [#allocation5], 1
    %s1022 = scalar_lea.sflag [#allocation5], 1
    %1023 = vsyncpa %s1022, 1

</llo_original>
